<compile_context>
chip_gen: v5e
topology: v5e:2x2
jax: 0.10.0
libtpu: 0.0.40
codegen_flags: <defaults>
</compile_context>

<pallas_src>
import math
import functools

import jax
import jax.numpy as jnp
from jax.experimental import pallas as pl
from jax.experimental.pallas import tpu as pltpu


def _classifier_output_kernel(ctx_ref, wq_ref, v_ref, out_ref, q_ref, *,
                              C, softmax_output, approx_softmax_recip):
    # ctx_ref: (Bt, Lq, E)   wq_ref: (E, E) pre-scaled by 1/sqrt(E), compute dtype
    # v_ref:   (Bt, Lkt, E)  out_ref: (Bt, Lq, Lkt)   q_ref: VMEM scratch (Bt, Lq, E)
    Bt, Lq, E = ctx_ref.shape
    k = pl.program_id(1)

    # Q = context @ W_q is independent of the Lk tile: compute it once per batch
    # tile (k == 0) into a persistent VMEM scratch and reuse it for every Lk step.
    # One large (Bt*Lq, E) @ (E, E) MXU pass for all folded batch elements.
    @pl.when(k == 0)
    def _():
        ctx2 = ctx_ref[...].reshape(Bt * Lq, E)   # copy-free when Lq % 8 == 0 (f32 path)
        ctx2 = ctx2.astype(wq_ref.dtype)          # no-op on the f32 path
        q = jnp.dot(ctx2, wq_ref[...], preferred_element_type=jnp.float32)
        q_ref[...] = q.reshape(Bt, Lq, E).astype(q_ref.dtype)

    # z = Q @ V^T: contract the LAST axis of both operands (batched dot_general,
    # no explicit transpose / XLU pass on V).
    z = jnp.einsum("bqe,bke->bqk", q_ref[...], v_ref[...],
                   preferred_element_type=jnp.float32)          # (Bt, Lq, Lkt)
    z = C * jnp.tanh(z)

    if softmax_output:
        # PyTorch F.softmax(z, dim=1): softmax over the Lq axis. Lq lives entirely
        # inside one tile, so this is exact even when Lk is tiled.
        m = jnp.max(z, axis=1, keepdims=True)
        e = jnp.exp(z - m)
        denom = jnp.sum(e, axis=1, keepdims=True)
        if approx_softmax_recip:
            z = e * pl.reciprocal(denom, approx=True)   # EUP slot; ~1e-3 rel error
        else:
            z = e / denom                               # exact normalization

    out_ref[...] = z.astype(out_ref.dtype)


def _largest_divisor_leq(n, cap):
    cap = max(1, min(n, cap))
    for d in range(cap, 0, -1):
        if n % d == 0:
            return d
    return 1


def _vmem_budget_bytes():
    # ~75% of physical VMEM: leaves headroom on v7x (64 MiB physical) and allows
    # > 64 MiB scoped VMEM on v5e/v6e (128 MiB physical).
    try:
        info = pltpu.get_tpu_info()
        cap = getattr(info, "vmem_capacity_bytes", None)
        if cap:
            return int(0.75 * cap)
    except Exception:
        pass
    return 48 * 1024 * 1024


def classifier_output(context, W_q, V_output, *, C=10, softmax_output=False,
                      use_bf16_matmul=False, approx_softmax_recip=False):
    """context: (B, Lq, E), W_q: (E, E) or (1, E, E), V_output: (B, Lk, E)
    returns: (B, Lq, Lk) in context.dtype"""
    B, Lq, E = context.shape
    Bv, Lk, E2 = V_output.shape
    W_q = jnp.asarray(W_q).reshape(E, E)   # accept the torch module's (1, E, E)
    assert Bv == B and E2 == E

    out_dtype = context.dtype
    compute_dtype = jnp.bfloat16 if use_bf16_matmul else context.dtype

    # ---- hoist per-step W_q work: fold 1/sqrt(E) scale (and bf16 cast) once ----
    wq = (W_q.astype(jnp.float32) * (1.0 / math.sqrt(E))).astype(compute_dtype)

    # ---- bf16 in HBM halves input DMA bytes (the bottleneck) ----
    v = V_output.astype(compute_dtype) if use_bf16_matmul else V_output
    if use_bf16_matmul and Lq % 16 == 0:
        ctx = context.astype(jnp.bfloat16)   # copy-free in-kernel reshape preserved
    else:
        ctx = context                        # cast after reshape inside the kernel

    ctx_isz = ctx.dtype.itemsize
    v_isz = v.dtype.itemsize
    wq_isz = wq.dtype.itemsize
    out_isz = jnp.dtype(out_dtype).itemsize
    q_isz = 2 if use_bf16_matmul else 4
    q_dtype = jnp.bfloat16 if use_bf16_matmul else jnp.float32

    # ---- VMEM-budget-driven tile selection (double-buffered ctx/V/out + Q scratch) ----
    def footprint(bt, lkt):
        per_b = (2 * (Lq * E * ctx_isz + lkt * E * v_isz + Lq * lkt * out_isz)
                 + Lq * E * q_isz)
        return bt * per_b

    budget = _vmem_budget_bytes()
    wq_bytes = 2 * E * E * wq_isz                      # double-buffered weight
    avail = max(1, budget - wq_bytes - (2 << 20))      # 2 MiB margin

    # Lk tile: full Lk when it fits at Bt=1; otherwise split into a multiple of 128
    # that divides Lk (block-shape constraint: full dim or multiple of 128).
    Lkt = Lk
    if footprint(1, Lk) > avail and Lk % 128 == 0:
        cands = [t for t in range(128, Lk + 1, 128)
                 if Lk % t == 0 and footprint(1, t) <= avail]
        if cands:
            Lkt = max(cands)

    # Batch tile: largest divisor of B within the VMEM budget; keep >= 2 batch grid
    # steps when B permits so v7x's two TensorCores both get work.
    bt_mem = max(1, avail // max(1, footprint(1, Lkt)))
    bt_cap = min(bt_mem, B if B < 2 else max(1, B // 2))
    Bt = _largest_divisor_leq(B, bt_cap)

    nb = B // Bt
    nk = Lk // Lkt
    grid = (nb, nk)

    vmem_limit = int(min(budget,
                         max(32 * 1024 * 1024,
                             footprint(Bt, Lkt) + wq_bytes + (2 << 20))))

    # ---- advisory cost estimate for XLA scheduling around the call ----
    flops = 2 * B * Lq * E * E + 2 * B * Lq * Lk * E
    transcendentals = B * Lq * Lk * (2 if softmax_output else 1)
    bytes_accessed = (B * Lq * E * ctx_isz + B * Lk * E * v_isz
                      + E * E * wq_isz + B * Lq * Lk * out_isz)
    cost = pl.CostEstimate(flops=flops, transcendentals=transcendentals,
                           bytes_accessed=bytes_accessed)

    kernel = functools.partial(
        _classifier_output_kernel,
        C=C, softmax_output=softmax_output,
        approx_softmax_recip=approx_softmax_recip)

    out = pl.pallas_call(
        kernel,
        out_shape=jax.ShapeDtypeStruct((B, Lq, Lk), out_dtype),
        grid_spec=pltpu.PrefetchScalarGridSpec(
            num_scalar_prefetch=0,
            grid=grid,
            in_specs=[
                pl.BlockSpec((Bt, Lq, E), lambda b, k: (b, 0, 0)),    # context
                pl.BlockSpec((E, E), lambda b, k: (0, 0)),            # W_q (shared)
                pl.BlockSpec((Bt, Lkt, E), lambda b, k: (b, k, 0)),   # V_output
            ],
            out_specs=pl.BlockSpec((Bt, Lq, Lkt), lambda b, k: (b, 0, k)),
            scratch_shapes=[pltpu.VMEM((Bt, Lq, E), q_dtype)],        # cached Q
        ),
        compiler_params=pltpu.CompilerParams(
            dimension_semantics=("parallel", "arbitrary"),
            vmem_limit_bytes=vmem_limit),
        cost_estimate=cost,
    )(ctx, wq, v)

    return out


def classifier_output_ref(context, W_q, V_output, *, C=10, softmax_output=False):
    """Pure-JAX reference matching the PyTorch forward."""
    E = context.shape[-1]
    W_q = jnp.asarray(W_q).reshape(E, E)
    Q = jnp.einsum("ble,ef->blf", context, W_q)
    z = jnp.einsum("ble,bke->blk", Q, V_output)
    z = z / math.sqrt(E)
    z = C * jnp.tanh(z)
    if softmax_output:
        z = jax.nn.softmax(z, axis=1)
    return z


if __name__ == "__main__":
    # Small shapes consistent with the module's forward.
    B, Lq, Lk, E = 2, 8, 8, 32
    C = 10

    key = jax.random.PRNGKey(0)
    k_ctx, k_v, k_w = jax.random.split(key, 3)

    context = jax.random.normal(k_ctx, (B, Lq, E), dtype=jnp.float32)
    V_output = jax.random.normal(k_v, (B, Lk, E), dtype=jnp.float32)

    # Deterministic init mirroring nn.Parameter(Tensor(1, E, E)).uniform_(-stdv, stdv).
    stdv = 1.0 / math.sqrt(E)
    W_q = jax.random.uniform(k_w, (1, E, E), dtype=jnp.float32,
                             minval=-stdv, maxval=stdv)

    # f32 matmuls, no softmax.
    out = jax.block_until_ready(
        classifier_output(context, W_q, V_output, C=C, softmax_output=False))
    ref = classifier_output_ref(context, W_q, V_output, C=C, softmax_output=False)
    assert out.shape == (B, Lq, Lk)
    assert jnp.allclose(out, ref, atol=1e-4, rtol=1e-4), "mismatch vs reference"

    # f32 matmuls, softmax over Lq (exact reciprocal by default).
    out_s = jax.block_until_ready(
        classifier_output(context, W_q, V_output, C=C, softmax_output=True))
    ref_s = classifier_output_ref(context, W_q, V_output, C=C, softmax_output=True)
    assert jnp.allclose(out_s, ref_s, atol=1e-4, rtol=1e-4), "softmax mismatch"

    # bf16 HBM inputs with f32 accumulation (loose tolerance vs f32 reference).
    out_bf = jax.block_until_ready(
        classifier_output(context, W_q, V_output, C=C, use_bf16_matmul=True))
    assert jnp.allclose(out_bf, ref, atol=5e-2, rtol=5e-2), "bf16 path mismatch"

    print("KERNEL_OK")
</pallas_src>

<mosaic_0001>
module attributes {stable_mosaic.version = 11 : i64} {
  func.func @_classifier_output_kernel(%arg0: i32, %arg1: i32, %arg2: memref<1x8x32xf32, #tpu.memory_space<vmem>>, %arg3: memref<32x32xf32, #tpu.memory_space<vmem>>, %arg4: memref<1x8x32xf32, #tpu.memory_space<vmem>>, %arg5: memref<1x8x8xf32, #tpu.memory_space<vmem>>, %arg6: memref<1x8x32xf32, #tpu.memory_space<vmem>>) attributes {dimension_semantics = [#tpu.dimension_semantics<parallel>, #tpu.dimension_semantics<arbitrary>], iteration_bounds = array<i64: 2, 1>, scalar_prefetch = 0 : i64, scratch_operands = 1 : i64, tpu.core_type = #tpu.core_type<tc>, window_params = [{transform_indices = @transform_0, window_bounds = array<i64: 1, 8, 32>}, {pipeline_mode = #tpu.pipeline_mode<synchronous>, transform_indices = @transform_1, window_bounds = array<i64: 32, 32>}, {transform_indices = @transform_2, window_bounds = array<i64: 1, 8, 32>}, {transform_indices = @transform_3, window_bounds = array<i64: 1, 8, 8>}]} {
    %c0_i32 = arith.constant 0 : i32
    %0 = arith.cmpi eq, %arg1, %c0_i32 : i32
    %1 = arith.extui %0 : i1 to i32
    %c0_i32_0 = arith.constant 0 : i32
    %2 = arith.cmpi ne, %1, %c0_i32_0 : i32
    scf.if %2 {
      %c0_10 = arith.constant 0 : index
      %c0_11 = arith.constant 0 : index
      %c0_12 = arith.constant 0 : index
      %10 = vector.load %arg2[%c0_10, %c0_11, %c0_12] : memref<1x8x32xf32, #tpu.memory_space<vmem>>, vector<1x8x32xf32>
      %11 = vector.shape_cast %10 : vector<1x8x32xf32> to vector<8x32xf32>
      %c0_13 = arith.constant 0 : index
      %c0_14 = arith.constant 0 : index
      %12 = vector.load %arg3[%c0_13, %c0_14] : memref<32x32xf32, #tpu.memory_space<vmem>>, vector<32x32xf32>
      %cst_15 = arith.constant dense<0.000000e+00> : vector<8x32xf32>
      %13 = tpu.matmul %11, %12, %cst_15 {dimension_numbers = #tpu.dot_dimension_numbers<[1], [0], [0], [1], [0, 0, 1, 1], [], []>} : vector<8x32xf32>, vector<32x32xf32>, vector<8x32xf32> -> vector<8x32xf32>
      %14 = vector.shape_cast %13 : vector<8x32xf32> to vector<1x8x32xf32>
      %c0_16 = arith.constant 0 : index
      %c0_17 = arith.constant 0 : index
      %c0_18 = arith.constant 0 : index
      %15 = vector.load %arg6[%c0_16, %c0_17, %c0_18] : memref<1x8x32xf32, #tpu.memory_space<vmem>>, vector<1x8x32xf32>
      tpu.vector_store %arg6[%c0_16, %c0_17, %c0_18], %14 {strides = array<i32>} : memref<1x8x32xf32, #tpu.memory_space<vmem>>, vector<1x8x32xf32>,
    } else {
    }
    %c0 = arith.constant 0 : index
    %c0_1 = arith.constant 0 : index
    %c0_2 = arith.constant 0 : index
    %3 = vector.load %arg6[%c0, %c0_1, %c0_2] : memref<1x8x32xf32, #tpu.memory_space<vmem>>, vector<1x8x32xf32>
    %c0_3 = arith.constant 0 : index
    %c0_4 = arith.constant 0 : index
    %c0_5 = arith.constant 0 : index
    %4 = vector.load %arg4[%c0_3, %c0_4, %c0_5] : memref<1x8x32xf32, #tpu.memory_space<vmem>>, vector<1x8x32xf32>
    "tpu.trace_start"() <{level = 10 : i32, message = "bqe,bke->bqk"}> : () -> ()
    %cst = arith.constant dense<0.000000e+00> : vector<1x8x8xf32>
    %5 = tpu.matmul %3, %4, %cst {dimension_numbers = #tpu.dot_dimension_numbers<[2], [2], [1], [1], [0, 0, 0, 1, 1, 1], [0], [0]>} : vector<1x8x32xf32>, vector<1x8x32xf32>, vector<1x8x8xf32> -> vector<1x8x8xf32>
    "tpu.trace_stop"() : () -> ()
    %6 = math.tanh %5 : vector<1x8x8xf32>
    %cst_6 = arith.constant 1.000000e+01 : f32
    %7 = vector.broadcast %cst_6 : f32 to vector<1x8x8xf32>
    %8 = arith.mulf %7, %6 : vector<1x8x8xf32>
    %c0_7 = arith.constant 0 : index
    %c0_8 = arith.constant 0 : index
    %c0_9 = arith.constant 0 : index
    %9 = vector.load %arg5[%c0_7, %c0_8, %c0_9] : memref<1x8x8xf32, #tpu.memory_space<vmem>>, vector<1x8x8xf32>
    tpu.vector_store %arg5[%c0_7, %c0_8, %c0_9], %8 {strides = array<i32>} : memref<1x8x8xf32, #tpu.memory_space<vmem>>, vector<1x8x8xf32>,
    return
  }
  func.func @transform_0(%arg0: i32, %arg1: i32) -> (i32, i32, i32) {
    %c0_i32 = arith.constant 0 : i32
    %c0_i32_0 = arith.constant 0 : i32
    %c0_i32_1 = arith.constant 0 : i32
    return %arg0, %c0_i32, %c0_i32_0 : i32, i32, i32
  }
  func.func @transform_1(%arg0: i32, %arg1: i32) -> (i32, i32) {
    %c0_i32 = arith.constant 0 : i32
    %c0_i32_0 = arith.constant 0 : i32
    %c0_i32_1 = arith.constant 0 : i32
    return %c0_i32, %c0_i32_0 : i32, i32
  }
  func.func @transform_2(%arg0: i32, %arg1: i32) -> (i32, i32, i32) {
    %c0_i32 = arith.constant 0 : i32
    %c0_i32_0 = arith.constant 0 : i32
    return %arg0, %arg1, %c0_i32 : i32, i32, i32
  }
  func.func @transform_3(%arg0: i32, %arg1: i32) -> (i32, i32, i32) {
    %c0_i32 = arith.constant 0 : i32
    %c0_i32_0 = arith.constant 0 : i32
    return %arg0, %c0_i32, %arg1 : i32, i32, i32
  }
}

</mosaic_0001>

<llo_original>
// kernel: tpu_custom_call.1
$region0: #{tpu_custom_call.1}
  #allocation0 [shape = 'u32[]', space=smem, size = 0x4, offset = 0x4, fixed_abs, tag = 'smem constant byte address 0x4 - core index']
  #allocation1 [shape = 'u32[72,128]{1,0:T(1,128)}', space=vmem, size = 0x9000, scoped, tag = 'internal scratch']
  #allocation2 [shape = 'f32[1,8,32]{2,1,0:T(8,128)}', space=vmem, size = 0x1000, scoped, tag = 'scratch operand']
  %s0 = inlined_call_operand.hbm [shape: f32[2,8,32], index: 0, kind: input, shape index: {}]
  %s1 = inlined_call_operand.hbm [shape: f32[32,32], index: 1, kind: input, shape index: {}]
  %s2 = inlined_call_operand.hbm [shape: f32[2,8,32], index: 2, kind: input, shape index: {}]
  %s3 = inlined_call_operand.hbm [shape: f32[2,8,8], index: 3, kind: output, shape index: {}]
  %s4 = sld [smem:[#allocation0]]
  $region61: #{tpu_custom_call.1} parent=0
    _
  %s6 = ssub.s32 1, %s4
  %s7 = scalar_select 0, %s6, %s4
  $region1: #{tpu_custom_call.1} parent=0
    #allocation3 [shape = 'u8[8192]{0}', space=vmem, size = 0x2000, scoped, tag = 'input window, operand 0']
    #allocation4 [shape = 's32[2]{0}', space=sflag, size = 0x8, scoped, tag = 'scoped memory for tpu_custom_call.1']
    #allocation5 [shape = 's32[2]{0}', space=sflag, size = 0x8, scoped, tag = 'scoped memory for tpu_custom_call.1']
    #allocation6 [shape = 'u8[16384]{0}', space=vmem, size = 0x4000, scoped, tag = 'input window, operand 1, single buffered']
    #allocation7 [shape = 's32[1]{0}', space=sflag, size = 0x4, scoped, tag = 'scoped memory for tpu_custom_call.1']
    #allocation8 [shape = 'u8[8192]{0}', space=vmem, size = 0x2000, scoped, tag = 'input window, operand 2']
    #allocation9 [shape = 'u8[8192]{0}', space=vmem, size = 0x2000, scoped, tag = 'output window, operand 0']
    %8 = vsyncpa [#allocation4], 0
    %s9 = scalar_lea.sflag [#allocation4], 1
    %10 = vsyncpa %s9, 0
    %11 = vsyncpa [#allocation7], 0
    %12 = vsyncpa [#allocation5], 0
    %s13 = scalar_lea.sflag [#allocation5], 1
    %14 = vsyncpa %s13, 0
    loop: start=0, step=1, limit=4
    $region2: #{tpu_custom_call.1} parent=1 // loop_pre_header
      _
    $region3: #{tpu_custom_call.1} parent=1 // loop_header
      %s16 = sphi 0, %s20
      %p17 = scmp.ge.s32.totalorder %s16, 4
      %s23 = sphi 0, %s35
      %s24 = sphi 0, %s31
      %s25 = sphi 0, %s23
      %s26 = sphi 0, %s24
      %s27 = sphi 0, %s25
      %s28 = sphi 0, %s26
      %s38 = sphi 0, %s40
      %s41 = sphi 0, %s38
      %s42 = sphi 0, %s41
      %s58 = sphi 0, %s42
      %s62 = sphi 0, %s62
      %s64 = sphi 0, %s62
      %s65 = sphi 0, %s64
      %s79 = sphi 0, %s65
      %s87 = sphi 0, %s89
      %s90 = sphi 0, %s87
      %s91 = sphi 0, %s90
      %s107 = sphi 0, %s91
      %s115 = sphi 0, %s117
      %s118 = sphi 0, %s115
      %s119 = sphi 0, %s118
      %s135 = sphi 0, %s119
    $region4: #{tpu_custom_call.1} parent=1 // loop_header_branch
      %19 = sbr.rel (%p17) target = $region8
    $region5: #{tpu_custom_call.1} parent=1 // loop_body
      %s21 = ssub.s32 %s16, 1
      %s22 = ssub.s32 %s16, 2
      %s29 = sadd.s32 1, %s24
      %p30 = scmp.ge.s32.totalorder %s29, 1
      %s31 = scalar_select %p30, 0, %s29
      %s32 = sadd.s32 1, %s23
      %s33 = scalar_select %p30, %s32, %s23
      %p34 = scmp.ge.s32.totalorder %s33, 2
      %s35 = scalar_select %p34, 0, %s33
      %s36 = ssub.s32 %s23, %s35
      %p37 = scmp.eq.s32.totalorder %s36, 0
      %s39 = sadd.s32 %s38, 1
      %s40 = scalar_select %p37, %s38, %s39
      %p43 = pneg %p37
      %p44 = scmp.eq.s32.totalorder %s16, 1
      %p45 = por %p43, %p44
      %p46 = scmp.ne.s32.totalorder %s38, %s41
      %p47 = scmp.eq.s32.totalorder %s16, 0
      %p48 = por %p46, %p47
      %p49 = scmp.ne.s32.totalorder %s38, %s41
      %p50 = scmp.eq.s32.totalorder %s21, 1
      %p51 = por %p49, %p50
      %p52 = scmp.ne.s32.totalorder %s41, %s42
      %p53 = scmp.eq.s32.totalorder %s21, 0
      %p54 = por %p52, %p53
      %p55 = scmp.ne.s32.totalorder %s41, %s42
      %p56 = scmp.eq.s32.totalorder %s22, 1
      %p57 = por %p55, %p56
      %p59 = scmp.ne.s32.totalorder %s42, %s58
      %p60 = scmp.eq.s32.totalorder %s22, 0
      %p61 = por %p59, %p60
      %s63 = sadd.s32 %s62, 1
      %p66 = scmp.eq.s32.totalorder %s16, 1
      %p67 = scmp.ne.s32.totalorder %s62, %s64
      %p68 = scmp.eq.s32.totalorder %s16, 0
      %p69 = por %p67, %p68
      %p70 = scmp.ne.s32.totalorder %s62, %s64
      %p71 = scmp.eq.s32.totalorder %s21, 1
      %p72 = por %p70, %p71
      %p73 = scmp.ne.s32.totalorder %s64, %s65
      %p74 = scmp.eq.s32.totalorder %s21, 0
      %p75 = por %p73, %p74
      %p76 = scmp.ne.s32.totalorder %s64, %s65
      %p77 = scmp.eq.s32.totalorder %s22, 1
      %p78 = por %p76, %p77
      %p80 = scmp.ne.s32.totalorder %s65, %s79
      %p81 = scmp.eq.s32.totalorder %s22, 0
      %p82 = por %p80, %p81
      %s83 = ssub.s32 %s23, %s35
      %s84 = ssub.s32 %s24, %s31
      %s85 = sor.u32 %s83, %s84
      %p86 = scmp.eq.s32.totalorder %s85, 0
      %s88 = sadd.s32 %s87, 1
      %s89 = scalar_select %p86, %s87, %s88
      %p92 = pneg %p86
      %p93 = scmp.eq.s32.totalorder %s16, 1
      %p94 = por %p92, %p93
      %p95 = scmp.ne.s32.totalorder %s87, %s90
      %p96 = scmp.eq.s32.totalorder %s16, 0
      %p97 = por %p95, %p96
      %p98 = scmp.ne.s32.totalorder %s87, %s90
      %p99 = scmp.eq.s32.totalorder %s21, 1
      %p100 = por %p98, %p99
      %p101 = scmp.ne.s32.totalorder %s90, %s91
      %p102 = scmp.eq.s32.totalorder %s21, 0
      %p103 = por %p101, %p102
      %p104 = scmp.ne.s32.totalorder %s90, %s91
      %p105 = scmp.eq.s32.totalorder %s22, 1
      %p106 = por %p104, %p105
      %p108 = scmp.ne.s32.totalorder %s91, %s107
      %p109 = scmp.eq.s32.totalorder %s22, 0
      %p110 = por %p108, %p109
      %s111 = ssub.s32 %s23, %s35
      %s112 = ssub.s32 %s24, %s31
      %s113 = sor.u32 %s111, %s112
      %p114 = scmp.eq.s32.totalorder %s113, 0
      %s116 = sadd.s32 %s115, 1
      %s117 = scalar_select %p114, %s115, %s116
      %p120 = pneg %p114
      %p121 = scmp.eq.s32.totalorder %s16, 1
      %p122 = por %p120, %p121
      %p123 = scmp.ne.s32.totalorder %s115, %s118
      %p124 = scmp.eq.s32.totalorder %s16, 0
      %p125 = por %p123, %p124
      %p126 = scmp.ne.s32.totalorder %s115, %s118
      %p127 = scmp.eq.s32.totalorder %s21, 1
      %p128 = por %p126, %p127
      %p129 = scmp.ne.s32.totalorder %s118, %s119
      %p130 = scmp.eq.s32.totalorder %s21, 0
      %p131 = por %p129, %p130
      %p132 = scmp.ne.s32.totalorder %s118, %s119
      %p133 = scmp.eq.s32.totalorder %s22, 1
      %p134 = por %p132, %p133
      %p136 = scmp.ne.s32.totalorder %s119, %s135
      %p137 = scmp.eq.s32.totalorder %s22, 0
      %p138 = por %p136, %p137
      %p139 = scmp.le.s32.totalorder 1, %s16
      %p140 = scmp.lt.s32.totalorder %s16, 3
      %p141 = pnand %p139, %p140
      %p142 = pneg %p141
      // Predicated region
      $region9: #{tpu_custom_call.1} parent=5 // pred_check
        _
      $region10: #{tpu_custom_call.1} parent=5 // pred_check_branch
        %144 = sbr.rel (%p141) target = $region12
      $region11: #{tpu_custom_call.1} parent=5 // pred_region
        %s145 = ssub.s32 %s16, 1
        // Predicated region
        $region13: #{tpu_custom_call.1} parent=11 // pred_check
          %p146 = pneg %p75
        $region14: #{tpu_custom_call.1} parent=11 // pred_check_branch
          %148 = sbr.rel (%p146) target = $region16
        $region15: #{tpu_custom_call.1} parent=11 // pred_region
          %150 = vsyncadd [#allocation7], 0
          %s151 = sshll.u32 %s1, 4
          %s152 = int_to_ptr.hbm [resolvable:$true] %s151
          %s153 = sshll.u32 [#allocation6], 4
          %s154 = int_to_ptr.vmem [resolvable:$true] %s153
          %159 = dma.hbm_to_vmem [thread:$0]  %s152, 512, %s154, [#allocation7], 128, 128, 8
        $region16: #{tpu_custom_call.1} parent=11 // pred_fallthru
          _
      $region12: #{tpu_custom_call.1} parent=5 // pred_fallthru
        _
      %p160 = scmp.lt.s32.totalorder %s16, 2
      // Predicated region
      $region17: #{tpu_custom_call.1} parent=5 // pred_check
        %p161 = pneg %p160
      $region18: #{tpu_custom_call.1} parent=5 // pred_check_branch
        %163 = sbr.rel (%p161) target = $region20
      $region19: #{tpu_custom_call.1} parent=5 // pred_region
        // Predicated region
        $region21: #{tpu_custom_call.1} parent=19 // pred_check
          %p164 = pneg %p48
        $region22: #{tpu_custom_call.1} parent=19 // pred_check_branch
          %166 = sbr.rel (%p164) target = $region24
        $region23: #{tpu_custom_call.1} parent=19 // pred_region
          %s167 = sand.u32 %s16, 1
          %s168 = scalar_lea.sflag [#allocation4], %s167
          %s169 = sand.u32 %s38, 1
          %s170 = smul.addr %s169, 8
          %s171 = scalar_lea.vmem [#allocation3], %s170
          %173 = vsyncadd %s168, 0
          %s174 = smul.addr %s23, 8
          %s175 = scalar_lea.hbm %s0, %s174
          %s177 = sshll.u32 %s175, 4
          %s178 = int_to_ptr.hbm [resolvable:$true] %s177
          %s179 = sshll.u32 %s171, 4
          %s180 = int_to_ptr.vmem [resolvable:$true] %s179
          %182 = dma.hbm_to_vmem [thread:$0]  %s178, 128, %s180, %s168
        $region24: #{tpu_custom_call.1} parent=19 // pred_fallthru
          _
        // Predicated region
        $region25: #{tpu_custom_call.1} parent=19 // pred_check
          %p183 = pneg %p97
        $region26: #{tpu_custom_call.1} parent=19 // pred_check_branch
          %185 = sbr.rel (%p183) target = $region28
        $region27: #{tpu_custom_call.1} parent=19 // pred_region
          %s186 = sand.u32 %s16, 1
          %s187 = scalar_lea.sflag [#allocation4], %s186
          %s188 = sand.u32 %s87, 1
          %s189 = smul.addr %s188, 8
          %s190 = scalar_lea.vmem [#allocation8], %s189
          %192 = vsyncadd %s187, 0
          %s193 = sadd.s32 %s24, %s23
          %s194 = smul.addr %s193, 8
          %s195 = scalar_lea.hbm %s2, %s194
          %s197 = sshll.u32 %s195, 4
          %s198 = int_to_ptr.hbm [resolvable:$true] %s197
          %s199 = sshll.u32 %s190, 4
          %s200 = int_to_ptr.vmem [resolvable:$true] %s199
          %202 = dma.hbm_to_vmem [thread:$0]  %s198, 128, %s200, %s187
        $region28: #{tpu_custom_call.1} parent=19 // pred_fallthru
          _
      $region20: #{tpu_custom_call.1} parent=5 // pred_fallthru
        _
      %p203 = scmp.le.s32.totalorder 1, %s16
      %p204 = scmp.lt.s32.totalorder %s16, 3
      %p205 = pnand %p203, %p204
      %p206 = pneg %p205
      // Predicated region
      $region29: #{tpu_custom_call.1} parent=5 // pred_check
        _
      $region30: #{tpu_custom_call.1} parent=5 // pred_check_branch
        %208 = sbr.rel (%p205) target = $region32
      $region31: #{tpu_custom_call.1} parent=5 // pred_region
        %s209 = ssub.s32 %s16, 1
        %s210 = sand.u32 %s21, 1
        %s211 = scalar_lea.sflag [#allocation4], %s210
        %s212 = sand.u32 %s41, 1
        %s213 = smul.addr %s212, 8
        %s214 = scalar_lea.vmem [#allocation3], %s213
        // Predicated region
        $region33: #{tpu_custom_call.1} parent=31 // pred_check
          %p215 = pneg %p54
        $region34: #{tpu_custom_call.1} parent=31 // pred_check_branch
          %217 = sbr.rel (%p215) target = $region36
        $region35: #{tpu_custom_call.1} parent=31 // pred_region
          %219 = dma.done %s211, 128
        $region36: #{tpu_custom_call.1} parent=31 // pred_fallthru
          _
        // Predicated region
        $region37: #{tpu_custom_call.1} parent=31 // pred_check
          %p220 = pneg %p75
        $region38: #{tpu_custom_call.1} parent=31 // pred_check_branch
          %222 = sbr.rel (%p220) target = $region40
        $region39: #{tpu_custom_call.1} parent=31 // pred_region
          %224 = dma.done [#allocation7], 512
        $region40: #{tpu_custom_call.1} parent=31 // pred_fallthru
          _
        %s225 = sand.u32 %s21, 1
        %s226 = scalar_lea.sflag [#allocation4], %s225
        %s227 = sand.u32 %s90, 1
        %s228 = smul.addr %s227, 8
        %s229 = scalar_lea.vmem [#allocation8], %s228
        // Predicated region
        $region41: #{tpu_custom_call.1} parent=31 // pred_check
          %p230 = pneg %p103
        $region42: #{tpu_custom_call.1} parent=31 // pred_check_branch
          %232 = sbr.rel (%p230) target = $region44
        $region43: #{tpu_custom_call.1} parent=31 // pred_region
          %234 = dma.done %s226, 128
        $region44: #{tpu_custom_call.1} parent=31 // pred_fallthru
          _
        %s235 = sand.u32 %s21, 1
        %s236 = scalar_lea.sflag [#allocation4], %s235
        %s237 = sand.u32 %s41, 1
        %s238 = smul.addr %s237, 8
        %s239 = scalar_lea.vmem [#allocation3], %s238
        %p240 = pneg %p54
        %p241 = pneg %p51
        %p242 = pneg %p75
        %p243 = pneg %p72
        %s244 = sand.u32 %s21, 1
        %s245 = scalar_lea.sflag [#allocation4], %s244
        %s246 = sand.u32 %s90, 1
        %s247 = smul.addr %s246, 8
        %s248 = scalar_lea.vmem [#allocation8], %s247
        %p249 = pneg %p103
        %p250 = pneg %p100
        %p251 = pneg %p131
        %p252 = pneg %p128
        %s253 = sand.u32 %s118, 1
        %s254 = scalar_lea.sflag [#allocation5], %s253
        %s255 = sand.u32 %s118, 1
        %s256 = smul.addr %s255, 8
        %s257 = scalar_lea.vmem [#allocation9], %s256
        %p258 = scmp.eq.s32.totalorder %s26, 0
        // Predicated region
        $region45: #{tpu_custom_call.1} parent=31 // pred_check
          %p259 = pneg %p258
        $region46: #{tpu_custom_call.1} parent=31 // pred_check_branch
          %261 = sbr.rel (%p259) target = $region48
        $region47: #{tpu_custom_call.1} parent=31 // pred_region
          %v262 = vld [vmem:[%s214] sm:$0xff]
          %v263 = vld [vmem:[#allocation6] sm:$0xff]
          %v264 = vld [vmem:[#allocation6 + $0x8] sm:$0xff]
          %v265 = vld [vmem:[#allocation6 + $0x10] sm:$0xff]
          %v266 = vld [vmem:[#allocation6 + $0x18] sm:$0xff]
          %vm267 = vcmask 261120
          %v269 = vsel %vm267, %v262, 0
          %271 = vmatpush.msra.mxu0 0.0
          %272 = vmatpush.msra.mxu0 0.0
          %273 = vmatpush.msra.mxu0 0.0
          %274 = vmatpush.msra.mxu0 0.0
          %275 = vmatpush.msra.mxu0 0.0
          %276 = vmatpush.msra.mxu0 0.0
          %277 = vmatpush.msra.mxu0 0.0
          %278 = vmatpush.msra.mxu0 0.0
          %279 = vmatpush.msra.mxu0 0.0
          %280 = vmatpush.msra.mxu0 0.0
          %281 = vmatpush.msra.mxu0 0.0
          %282 = vmatpush.msra.mxu0 0.0
          %283 = vmatpush.msra.mxu0 %v266
          %284 = vmatpush.msra.mxu0 %v265
          %285 = vmatpush.msra.mxu0 %v264
          %286 = vmatpush.msra.mxu0 %v263
          %287 = vmatmul.f32.gmra.mxu0 %v269
          %v288 = vpop.f32.mrf.mxu0
          %v289 = vadd.f32 0.0, %v288
          %290 = vdwg.mxu0
          %291 = vst.msk [vmem:[#allocation2] sm:$0xff] %vm267, %v289
        $region48: #{tpu_custom_call.1} parent=31 // pred_fallthru
          _
        %v292 = vld [vmem:[#allocation2] sm:$0xff]
        %v293 = vld [vmem:[%s229] sm:$0xff]
        %vm294 = vcmask 261120
        %v296 = vsel %vm294, %v292, 0
        %v299 = vsel %vm294, %v293, 0
        %301 = vmatpush.xpose.msra.mxu0 0.0
        %302 = vmatpush.xpose.msra.mxu0 0.0
        %303 = vmatpush.xpose.msra.mxu0 0.0
        %304 = vmatpush.xpose.msra.mxu0 0.0
        %305 = vmatpush.xpose.msra.mxu0 0.0
        %306 = vmatpush.xpose.msra.mxu0 0.0
        %307 = vmatpush.xpose.msra.mxu0 0.0
        %308 = vmatpush.xpose.msra.mxu0 0.0
        %309 = vmatpush.xpose.msra.mxu0 0.0
        %310 = vmatpush.xpose.msra.mxu0 0.0
        %311 = vmatpush.xpose.msra.mxu0 0.0
        %312 = vmatpush.xpose.msra.mxu0 0.0
        %313 = vmatpush.xpose.msra.mxu0 0.0
        %314 = vmatpush.xpose.msra.mxu0 0.0
        %315 = vmatpush.xpose.msra.mxu0 0.0
        %316 = vmatpush.xpose.msra.mxu0 %v299
        %317 = vmatmul.f32.gmra.mxu0 %v296
        %v318 = vpop.f32.mrf.mxu0
        %v319 = vadd.f32 0.0, %v318
        %320 = vdwg.mxu0
        %v321 = vtanh.pop %v319
        %v322 = vmul.f32 %v321, 10.0
        %vm323 = vcmask 64512
        %324 = vst.msk [vmem:[%s257] sm:$0xff] %vm323, %v322
        %s325 = sand.u32 %s118, 1
        %s326 = scalar_lea.sflag [#allocation5], %s325
        %s327 = sand.u32 %s118, 1
        %s328 = smul.addr %s327, 8
        %s329 = scalar_lea.vmem [#allocation9], %s328
        // Predicated region
        $region49: #{tpu_custom_call.1} parent=31 // pred_check
          %p330 = pneg %p128
        $region50: #{tpu_custom_call.1} parent=31 // pred_check_branch
          %332 = sbr.rel (%p330) target = $region52
        $region51: #{tpu_custom_call.1} parent=31 // pred_region
          %334 = vsyncadd %s326, 0
          %s335 = sadd.s32 %s26, %s25
          %s336 = smul.addr %s335, 8
          %s337 = scalar_lea.hbm %s3, %s336
          %s339 = sshll.u32 %s329, 4
          %s340 = int_to_ptr.vmem [resolvable:$true] %s339
          %s341 = sshll.u32 %s337, 4
          %s342 = int_to_ptr.hbm [resolvable:$true] %s341
          %344 = dma.vmem_to_hbm [thread:$0]  %s340, 128, %s342, %s326
        $region52: #{tpu_custom_call.1} parent=31 // pred_fallthru
          _
      $region32: #{tpu_custom_call.1} parent=5 // pred_fallthru
        _
      %p345 = scmp.le.s32.totalorder 2, %s16
      // Predicated region
      $region53: #{tpu_custom_call.1} parent=5 // pred_check
        %p346 = pneg %p345
      $region54: #{tpu_custom_call.1} parent=5 // pred_check_branch
        %348 = sbr.rel (%p346) target = $region56
      $region55: #{tpu_custom_call.1} parent=5 // pred_region
        %s349 = ssub.s32 %s16, 2
        // Predicated region
        $region57: #{tpu_custom_call.1} parent=55 // pred_check
          %p350 = pneg %p134
        $region58: #{tpu_custom_call.1} parent=55 // pred_check_branch
          %352 = sbr.rel (%p350) target = $region60
        $region59: #{tpu_custom_call.1} parent=55 // pred_region
          %s353 = sand.u32 %s119, 1
          %s354 = scalar_lea.sflag [#allocation5], %s353
          %s355 = sand.u32 %s119, 1
          %s356 = smul.addr %s355, 8
          %s357 = scalar_lea.vmem [#allocation9], %s356
          %359 = dma.done %s354, 128
        $region60: #{tpu_custom_call.1} parent=55 // pred_fallthru
          _
      $region56: #{tpu_custom_call.1} parent=5 // pred_fallthru
        _
    $region6: #{tpu_custom_call.1} parent=1 // loop_footer
      %s20 = sadd.s32 1, %s16
    $region7: #{tpu_custom_call.1} parent=1 // loop_footer_branch
      %15 = sbr.rel target = $region3
    $region8: #{tpu_custom_call.1} parent=1 // loop_exit
      _
    %360 = vsyncpa [#allocation4], 1
    %s361 = scalar_lea.sflag [#allocation4], 1
    %362 = vsyncpa %s361, 1
    %363 = vsyncpa [#allocation7], 1
    %364 = vsyncpa [#allocation5], 1
    %s365 = scalar_lea.sflag [#allocation5], 1
    %366 = vsyncpa %s365, 1

</llo_original>
